<compile_context>
chip_gen: v5e
topology: v5e:2x2
jax: 0.10.0
libtpu: 0.0.40
codegen_flags: <defaults>
</compile_context>

<pallas_src>
import jax
import jax.numpy as jnp
from jax.experimental import pallas as pl
from jax.experimental.pallas import tpu as pltpu

NEG_SLOPE = 0.01   # F.leaky_relu default
HIDDEN = 100
HPAD = 128         # hidden dim padded to a full lane/sublane width


def _leaky_relu(x):
    return jnp.where(x > 0, x, NEG_SLOPE * x)


def _round_up(n, m):
    return ((n + m - 1) // m) * m


def fcsmall_kernel(xr_ref, w1_ref, wstack_ref, vecs_ref, out_ref):
    # xr_ref:     (x_dim+1, TB) f32   -- rows 0..x_dim-1 = bx.T, last row = br.T
    # w1_ref:     (128, x_dim) f32    -- fc1 weight, PyTorch (out, in) layout, out-padded
    # wstack_ref: (2, 128, 128) bf16  -- fc2/fc3 hidden->hidden weights, (out, in), padded
    # vecs_ref:   (128, 8) f32        -- cols: b1, w2r, b2, w3r, b3, w4_mean, w4_std, b4
    # out_ref:    (2, TB) f32         -- row 0 = mean, row 1 = stddev (lane-dense)
    x_dim = xr_ref.shape[0] - 1
    r_row = xr_ref[x_dim:x_dim + 1, :]        # (1, TB)

    b1 = vecs_ref[:, 0:1]                     # (128, 1)
    w2r = vecs_ref[:, 1:2]
    b2 = vecs_ref[:, 2:3]
    w3r = vecs_ref[:, 3:4]
    b3 = vecs_ref[:, 4:5]
    w4m = vecs_ref[:, 5:6]                    # fc4 row 0 (mean head)
    w4s = vecs_ref[:, 6:7]                    # fc4 row 1 (stddev head)
    b4m = vecs_ref[0:1, 7:8]                  # (1, 1)
    b4s = vecs_ref[1:2, 7:8]                  # (1, 1)

    # fc1 + leaky_relu.  Batch on the lane axis; K == 1 -> VPU outer product.
    if x_dim == 1:
        h = w1_ref[...] * xr_ref[0:1, :] + b1
    else:
        h = jnp.dot(w1_ref[...], xr_ref[0:x_dim, :],
                    preferred_element_type=jnp.float32) + b1
    h = _leaky_relu(h)                                        # (128, TB) f32

    # cat([h, br]) -> fc2 + leaky_relu   (concat folded into split weights)
    h = (jnp.dot(wstack_ref[0], h.astype(jnp.bfloat16),
                 preferred_element_type=jnp.float32)
         + w2r * r_row + b2)
    h = _leaky_relu(h)                                        # (128, TB)

    # cat([h, br]) -> fc3 + leaky_relu
    h = (jnp.dot(wstack_ref[1], h.astype(jnp.bfloat16),
                 preferred_element_type=jnp.float32)
         + w3r * r_row + b3)
    h = _leaky_relu(h)                                        # (128, TB)

    # drop3: Dropout(0.5) is identity in eval mode.
    # TODO(synk): training-mode dropout (pltpu.prng_random_bits mask) not wired in.

    # fc4 off the MXU: VPU multiply + cross-sublane (XLU) reduction produces
    # lane-dense (1, TB) rows directly; sigmoid only on the stddev row.
    mean_row = jnp.sum(h * w4m, axis=0, keepdims=True) + b4m             # (1, TB)
    std_row = jax.nn.sigmoid(
        jnp.sum(h * w4s, axis=0, keepdims=True) + b4s) * 5.0 + 0.01      # (1, TB)

    out_ref[0:1, :] = mean_row
    out_ref[1:2, :] = std_row


def fcsmall_forward(bx, br, params, *, block_b=1024, min_steps=1):
    """Fused FcSmall forward.

    block_b:   max batch tile (lane) width.  Larger on v5e/v6e amortizes the
               ~0.35us per-grid-step overhead (VMEM use here is only a few MiB).
    min_steps: set to 2 on v7x so the "parallel" batch axis shards across both
               TensorCores; keep 1 on single-TC v5e/v6e.
    """
    B, x_dim = bx.shape
    # Merge bx and br into one lane-dense (x_dim+1, B) input (batch on lanes).
    xr = jnp.concatenate([bx.T, br.T], axis=0)

    # Choose batch tile: multiple of 128, or a single block spanning the batch.
    n_steps = max(min_steps, pl.cdiv(B, block_b))
    TB = _round_up(pl.cdiv(B, n_steps), 128)
    if TB >= B:
        TB = B_pad = _round_up(B, 8)          # single block; lane dim == full dim
    else:
        B_pad = _round_up(B, TB)
    if B_pad != B:
        xr = jnp.pad(xr, ((0, 0), (0, B_pad - B)))

    out = pl.pallas_call(
        fcsmall_kernel,
        out_shape=jax.ShapeDtypeStruct((2, B_pad), jnp.float32),
        grid=(B_pad // TB,),
        in_specs=[
            pl.BlockSpec((x_dim + 1, TB), lambda i: (0, i)),          # xr (batch-tiled)
            pl.BlockSpec(params["w1"].shape, lambda i: (0, 0)),        # resident
            pl.BlockSpec(params["wstack"].shape, lambda i: (0, 0, 0)), # resident
            pl.BlockSpec(params["vecs"].shape, lambda i: (0, 0)),      # resident
        ],
        out_specs=pl.BlockSpec((2, TB), lambda i: (0, i)),             # lane-dense
        compiler_params=pltpu.CompilerParams(
            dimension_semantics=("parallel",)),
    )(xr, params["w1"], params["wstack"], params["vecs"])

    mean = out[0, :B].reshape(B, 1)
    stddev = out[1, :B].reshape(B, 1)
    return mean, stddev


def init_params(key, x_dim=1):
    """nn.Linear-style init (uniform(-1/sqrt(fan_in), +)); returns packed + raw."""
    ks = jax.random.split(key, 8)

    def linear(kw, kb, fan_in, fan_out):
        bound = fan_in ** -0.5
        w = jax.random.uniform(kw, (fan_in, fan_out), jnp.float32, -bound, bound)
        b = jax.random.uniform(kb, (fan_out,), jnp.float32, -bound, bound)
        return w, b

    w1, b1 = linear(ks[0], ks[1], x_dim, HIDDEN)        # fc1: Linear(x_dim, 100)
    w2, b2 = linear(ks[2], ks[3], HIDDEN + 1, HIDDEN)   # fc2: Linear(101, 100)
    w3, b3 = linear(ks[4], ks[5], HIDDEN + 1, HIDDEN)   # fc3: Linear(101, 100)
    w4, b4 = linear(ks[6], ks[7], HIDDEN, 2)            # fc4: Linear(100, 2)

    raw = dict(w1=w1, b1=b1, w2=w2, b2=b2, w3=w3, b3=b3, w4=w4, b4=b4)

    def pad_col(v):                    # (100,) -> (128, 1), zero-padded
        return jnp.pad(v, (0, HPAD - v.shape[0])).reshape(HPAD, 1)

    def pad_sq_t(m):                   # (in=100, out=100) -> (out, in) padded to (128,128)
        return jnp.pad(m.T, ((0, HPAD - m.shape[1]), (0, HPAD - m.shape[0])))

    w1T = jnp.pad(w1.T, ((0, HPAD - HIDDEN), (0, 0)))    # (128, x_dim)
    w2hT = pad_sq_t(w2[:HIDDEN])                          # (128, 128)
    w3hT = pad_sq_t(w3[:HIDDEN])
    w2r = pad_col(w2[HIDDEN])                             # br column of fc2
    w3r = pad_col(w3[HIDDEN])                             # br column of fc3
    w4m = pad_col(w4[:, 0])                               # fc4 mean head
    w4s = pad_col(w4[:, 1])                               # fc4 stddev head
    b4col = (jnp.zeros((HPAD, 1), jnp.float32)
             .at[0, 0].set(b4[0]).at[1, 0].set(b4[1]))

    vecs = jnp.concatenate(
        [pad_col(b1), w2r, pad_col(b2), w3r, pad_col(b3), w4m, w4s, b4col],
        axis=1)                                           # (128, 8) f32

    packed = {
        "w1": w1T,                                        # f32 (VPU path for x_dim==1)
        "wstack": jnp.stack([w2hT, w3hT]).astype(jnp.bfloat16),  # (2,128,128)
        "vecs": vecs,                                     # (128, 8) f32
    }
    return packed, raw


def _reference_f32(bx, br, raw):
    """Exact PyTorch-semantics forward in f32 (loose check vs bf16 MXU kernel)."""
    h = _leaky_relu(jnp.dot(bx, raw["w1"]) + raw["b1"])
    h = jnp.concatenate([h, br], axis=1)
    h = _leaky_relu(jnp.dot(h, raw["w2"]) + raw["b2"])
    h = jnp.concatenate([h, br], axis=1)
    h = _leaky_relu(jnp.dot(h, raw["w3"]) + raw["b3"])
    h = jnp.dot(h, raw["w4"]) + raw["b4"]
    return h[:, 0:1], jax.nn.sigmoid(h[:, 1:2]) * 5.0 + 0.01


def _reference_matched(bx, br, p):
    """Same math / dtypes / orientation as the kernel, in plain JAX (tight check)."""
    v = p["vecs"]
    b1, w2r, b2, w3r, b3, w4m, w4s, b4c = (v[:, i:i + 1] for i in range(8))
    xT, rT = bx.T, br.T
    if bx.shape[1] == 1:
        h = p["w1"] * xT + b1
    else:
        h = jnp.dot(p["w1"], xT, preferred_element_type=jnp.float32) + b1
    h = _leaky_relu(h)
    h = _leaky_relu(jnp.dot(p["wstack"][0], h.astype(jnp.bfloat16),
                            preferred_element_type=jnp.float32) + w2r * rT + b2)
    h = _leaky_relu(jnp.dot(p["wstack"][1], h.astype(jnp.bfloat16),
                            preferred_element_type=jnp.float32) + w3r * rT + b3)
    mean = jnp.sum(h * w4m, axis=0, keepdims=True) + b4c[0, 0]
    std = jax.nn.sigmoid(jnp.sum(h * w4s, axis=0, keepdims=True) + b4c[1, 0]) * 5.0 + 0.01
    return mean.T, std.T


if __name__ == "__main__":
    key = jax.random.PRNGKey(0)
    k_param, k_x, k_r = jax.random.split(key, 3)

    B, X_DIM = 8, 1
    params, raw = init_params(k_param, x_dim=X_DIM)
    bx = jax.random.normal(k_x, (B, X_DIM), jnp.float32)
    br = jax.random.uniform(k_r, (B, 1), jnp.float32)   # stands in for torch.rand

    mean, stddev = fcsmall_forward(bx, br, params)
    jax.block_until_ready((mean, stddev))

    # Tight check against a reference using identical math / dtypes / layout.
    m_match, s_match = _reference_matched(bx, br, params)
    assert jnp.allclose(mean, m_match, atol=2e-3, rtol=2e-3), "mean mismatch (matched ref)"
    assert jnp.allclose(stddev, s_match, atol=2e-3, rtol=2e-3), "stddev mismatch (matched ref)"

    # Loose sanity check against the exact f32 PyTorch-semantics reference
    # (kernel fc2/fc3 matmuls run bf16 on the MXU with f32 accumulation).
    m_f32, s_f32 = _reference_f32(bx, br, raw)
    assert jnp.allclose(mean, m_f32, atol=1e-1, rtol=1e-1), "mean mismatch (f32 ref)"
    assert jnp.allclose(stddev, s_f32, atol=1e-1, rtol=1e-1), "stddev mismatch (f32 ref)"

    print("KERNEL_OK")
</pallas_src>

<mosaic_0001>
module attributes {stable_mosaic.version = 11 : i64} {
  func.func @fcsmall_kernel(%arg0: i32, %arg1: memref<2x8xf32, #tpu.memory_space<vmem>>, %arg2: memref<128x1xf32, #tpu.memory_space<vmem>>, %arg3: memref<2x128x128xbf16, #tpu.memory_space<vmem>>, %arg4: memref<128x8xf32, #tpu.memory_space<vmem>>, %arg5: memref<2x8xf32, #tpu.memory_space<vmem>>) attributes {dimension_semantics = [#tpu.dimension_semantics<parallel>], iteration_bounds = array<i64: 1>, scalar_prefetch = 0 : i64, scratch_operands = 0 : i64, tpu.core_type = #tpu.core_type<tc>, window_params = [{transform_indices = @transform_0, window_bounds = array<i64: 2, 8>}, {pipeline_mode = #tpu.pipeline_mode<synchronous>, transform_indices = @transform_1, window_bounds = array<i64: 128, 1>}, {pipeline_mode = #tpu.pipeline_mode<synchronous>, transform_indices = @transform_2, window_bounds = array<i64: 2, 128, 128>}, {pipeline_mode = #tpu.pipeline_mode<synchronous>, transform_indices = @transform_3, window_bounds = array<i64: 128, 8>}, {transform_indices = @transform_4, window_bounds = array<i64: 2, 8>}]} {
    %c1 = arith.constant 1 : index
    %c0 = arith.constant 0 : index
    %0 = vector.load %arg1[%c1, %c0] : memref<2x8xf32, #tpu.memory_space<vmem>>, vector<1x8xf32>
    %c0_0 = arith.constant 0 : index
    %c0_1 = arith.constant 0 : index
    %1 = vector.load %arg4[%c0_0, %c0_1] : memref<128x8xf32, #tpu.memory_space<vmem>>, vector<128x1xf32>
    %c0_2 = arith.constant 0 : index
    %c1_3 = arith.constant 1 : index
    %2 = vector.load %arg4[%c0_2, %c1_3] : memref<128x8xf32, #tpu.memory_space<vmem>>, vector<128x1xf32>
    %c0_4 = arith.constant 0 : index
    %c2 = arith.constant 2 : index
    %3 = vector.load %arg4[%c0_4, %c2] : memref<128x8xf32, #tpu.memory_space<vmem>>, vector<128x1xf32>
    %c0_5 = arith.constant 0 : index
    %c3 = arith.constant 3 : index
    %4 = vector.load %arg4[%c0_5, %c3] : memref<128x8xf32, #tpu.memory_space<vmem>>, vector<128x1xf32>
    %c0_6 = arith.constant 0 : index
    %c4 = arith.constant 4 : index
    %5 = vector.load %arg4[%c0_6, %c4] : memref<128x8xf32, #tpu.memory_space<vmem>>, vector<128x1xf32>
    %c0_7 = arith.constant 0 : index
    %c5 = arith.constant 5 : index
    %6 = vector.load %arg4[%c0_7, %c5] : memref<128x8xf32, #tpu.memory_space<vmem>>, vector<128x1xf32>
    %c0_8 = arith.constant 0 : index
    %c6 = arith.constant 6 : index
    %7 = vector.load %arg4[%c0_8, %c6] : memref<128x8xf32, #tpu.memory_space<vmem>>, vector<128x1xf32>
    %c0_9 = arith.constant 0 : index
    %c7 = arith.constant 7 : index
    %8 = vector.load %arg4[%c0_9, %c7] : memref<128x8xf32, #tpu.memory_space<vmem>>, vector<1x1xf32>
    %c1_10 = arith.constant 1 : index
    %c7_11 = arith.constant 7 : index
    %9 = vector.load %arg4[%c1_10, %c7_11] : memref<128x8xf32, #tpu.memory_space<vmem>>, vector<1x1xf32>
    %c0_12 = arith.constant 0 : index
    %c0_13 = arith.constant 0 : index
    %10 = vector.load %arg2[%c0_12, %c0_13] : memref<128x1xf32, #tpu.memory_space<vmem>>, vector<128x1xf32>
    %c0_14 = arith.constant 0 : index
    %c0_15 = arith.constant 0 : index
    %11 = vector.load %arg1[%c0_14, %c0_15] : memref<2x8xf32, #tpu.memory_space<vmem>>, vector<1x8xf32>
    %12 = vector.broadcast %10 : vector<128x1xf32> to vector<128x8xf32>
    %13 = vector.broadcast %11 : vector<1x8xf32> to vector<128x8xf32>
    %14 = arith.mulf %12, %13 : vector<128x8xf32>
    %15 = vector.broadcast %1 : vector<128x1xf32> to vector<128x8xf32>
    %16 = arith.addf %14, %15 : vector<128x8xf32>
    %cst = arith.constant 0.000000e+00 : f32
    %17 = vector.broadcast %cst : f32 to vector<128x8xf32>
    %18 = arith.cmpf ogt, %16, %17 : vector<128x8xf32>
    %cst_16 = arith.constant 0.00999999977 : f32
    %19 = vector.broadcast %cst_16 : f32 to vector<128x8xf32>
    %20 = arith.mulf %19, %16 : vector<128x8xf32>
    %21 = arith.select %18, %16, %20 : vector<128x8xi1>, vector<128x8xf32>
    %c0_17 = arith.constant 0 : index
    %c0_18 = arith.constant 0 : index
    %c0_19 = arith.constant 0 : index
    %22 = vector.load %arg3[%c0_17, %c0_18, %c0_19] : memref<2x128x128xbf16, #tpu.memory_space<vmem>>, vector<1x128x128xbf16>
    %23 = vector.shape_cast %22 : vector<1x128x128xbf16> to vector<128x128xbf16>
    %24 = arith.truncf %21 : vector<128x8xf32> to vector<128x8xbf16>
    %cst_20 = arith.constant dense<0.000000e+00> : vector<128x8xf32>
    %25 = tpu.matmul %23, %24, %cst_20 {dimension_numbers = #tpu.dot_dimension_numbers<[1], [0], [0], [1], [0, 0, 1, 1], [], []>} : vector<128x128xbf16>, vector<128x8xbf16>, vector<128x8xf32> -> vector<128x8xf32>
    %26 = vector.broadcast %2 : vector<128x1xf32> to vector<128x8xf32>
    %27 = vector.broadcast %0 : vector<1x8xf32> to vector<128x8xf32>
    %28 = arith.mulf %26, %27 : vector<128x8xf32>
    %29 = arith.addf %25, %28 : vector<128x8xf32>
    %30 = vector.broadcast %3 : vector<128x1xf32> to vector<128x8xf32>
    %31 = arith.addf %29, %30 : vector<128x8xf32>
    %cst_21 = arith.constant 0.000000e+00 : f32
    %32 = vector.broadcast %cst_21 : f32 to vector<128x8xf32>
    %33 = arith.cmpf ogt, %31, %32 : vector<128x8xf32>
    %cst_22 = arith.constant 0.00999999977 : f32
    %34 = vector.broadcast %cst_22 : f32 to vector<128x8xf32>
    %35 = arith.mulf %34, %31 : vector<128x8xf32>
    %36 = arith.select %33, %31, %35 : vector<128x8xi1>, vector<128x8xf32>
    %c1_23 = arith.constant 1 : index
    %c0_24 = arith.constant 0 : index
    %c0_25 = arith.constant 0 : index
    %37 = vector.load %arg3[%c1_23, %c0_24, %c0_25] : memref<2x128x128xbf16, #tpu.memory_space<vmem>>, vector<1x128x128xbf16>
    %38 = vector.shape_cast %37 : vector<1x128x128xbf16> to vector<128x128xbf16>
    %39 = arith.truncf %36 : vector<128x8xf32> to vector<128x8xbf16>
    %cst_26 = arith.constant dense<0.000000e+00> : vector<128x8xf32>
    %40 = tpu.matmul %38, %39, %cst_26 {dimension_numbers = #tpu.dot_dimension_numbers<[1], [0], [0], [1], [0, 0, 1, 1], [], []>} : vector<128x128xbf16>, vector<128x8xbf16>, vector<128x8xf32> -> vector<128x8xf32>
    %41 = vector.broadcast %4 : vector<128x1xf32> to vector<128x8xf32>
    %42 = vector.broadcast %0 : vector<1x8xf32> to vector<128x8xf32>
    %43 = arith.mulf %41, %42 : vector<128x8xf32>
    %44 = arith.addf %40, %43 : vector<128x8xf32>
    %45 = vector.broadcast %5 : vector<128x1xf32> to vector<128x8xf32>
    %46 = arith.addf %44, %45 : vector<128x8xf32>
    %cst_27 = arith.constant 0.000000e+00 : f32
    %47 = vector.broadcast %cst_27 : f32 to vector<128x8xf32>
    %48 = arith.cmpf ogt, %46, %47 : vector<128x8xf32>
    %cst_28 = arith.constant 0.00999999977 : f32
    %49 = vector.broadcast %cst_28 : f32 to vector<128x8xf32>
    %50 = arith.mulf %49, %46 : vector<128x8xf32>
    %51 = arith.select %48, %46, %50 : vector<128x8xi1>, vector<128x8xf32>
    %52 = vector.broadcast %6 : vector<128x1xf32> to vector<128x8xf32>
    %53 = arith.mulf %51, %52 : vector<128x8xf32>
    %cst_29 = arith.constant dense<0.000000e+00> : vector<8xf32>
    %54 = vector.multi_reduction <add>, %53, %cst_29 [0] : vector<128x8xf32> to vector<8xf32>
    %55 = vector.shape_cast %54 : vector<8xf32> to vector<1x8xf32>
    %56 = vector.broadcast %8 : vector<1x1xf32> to vector<1x8xf32>
    %57 = arith.addf %55, %56 : vector<1x8xf32>
    %58 = vector.broadcast %7 : vector<128x1xf32> to vector<128x8xf32>
    %59 = arith.mulf %51, %58 : vector<128x8xf32>
    %cst_30 = arith.constant dense<0.000000e+00> : vector<8xf32>
    %60 = vector.multi_reduction <add>, %59, %cst_30 [0] : vector<128x8xf32> to vector<8xf32>
    %61 = vector.shape_cast %60 : vector<8xf32> to vector<1x8xf32>
    %62 = vector.broadcast %9 : vector<1x1xf32> to vector<1x8xf32>
    %63 = arith.addf %61, %62 : vector<1x8xf32>
    %64 = arith.negf %63 : vector<1x8xf32>
    %65 = math.exp %64 : vector<1x8xf32>
    %cst_31 = arith.constant 1.000000e+00 : f32
    %66 = vector.broadcast %cst_31 : f32 to vector<1x8xf32>
    %67 = arith.addf %66, %65 : vector<1x8xf32>
    %68 = arith.divf %66, %67 : vector<1x8xf32>
    %cst_32 = arith.constant 5.000000e+00 : f32
    %69 = vector.broadcast %cst_32 : f32 to vector<1x8xf32>
    %70 = arith.mulf %68, %69 : vector<1x8xf32>
    %cst_33 = arith.constant 0.00999999977 : f32
    %71 = vector.broadcast %cst_33 : f32 to vector<1x8xf32>
    %72 = arith.addf %70, %71 : vector<1x8xf32>
    %c0_34 = arith.constant 0 : index
    %c0_35 = arith.constant 0 : index
    %73 = vector.load %arg5[%c0_34, %c0_35] : memref<2x8xf32, #tpu.memory_space<vmem>>, vector<1x8xf32>
    tpu.vector_store %arg5[%c0_34, %c0_35], %57 {strides = array<i32>} : memref<2x8xf32, #tpu.memory_space<vmem>>, vector<1x8xf32>,
    %c1_36 = arith.constant 1 : index
    %c0_37 = arith.constant 0 : index
    %74 = vector.load %arg5[%c1_36, %c0_37] : memref<2x8xf32, #tpu.memory_space<vmem>>, vector<1x8xf32>
    tpu.vector_store %arg5[%c1_36, %c0_37], %72 {strides = array<i32>} : memref<2x8xf32, #tpu.memory_space<vmem>>, vector<1x8xf32>,
    return
  }
  func.func @transform_0(%arg0: i32) -> (i32, i32) {
    %c0_i32 = arith.constant 0 : i32
    %c0_i32_0 = arith.constant 0 : i32
    return %c0_i32, %arg0 : i32, i32
  }
  func.func @transform_1(%arg0: i32) -> (i32, i32) {
    %c0_i32 = arith.constant 0 : i32
    %c0_i32_0 = arith.constant 0 : i32
    %c0_i32_1 = arith.constant 0 : i32
    return %c0_i32, %c0_i32_0 : i32, i32
  }
  func.func @transform_2(%arg0: i32) -> (i32, i32, i32) {
    %c0_i32 = arith.constant 0 : i32
    %c0_i32_0 = arith.constant 0 : i32
    %c0_i32_1 = arith.constant 0 : i32
    %c0_i32_2 = arith.constant 0 : i32
    return %c0_i32, %c0_i32_0, %c0_i32_1 : i32, i32, i32
  }
  func.func @transform_3(%arg0: i32) -> (i32, i32) {
    %c0_i32 = arith.constant 0 : i32
    %c0_i32_0 = arith.constant 0 : i32
    %c0_i32_1 = arith.constant 0 : i32
    return %c0_i32, %c0_i32_0 : i32, i32
  }
  func.func @transform_4(%arg0: i32) -> (i32, i32) {
    %c0_i32 = arith.constant 0 : i32
    %c0_i32_0 = arith.constant 0 : i32
    return %c0_i32, %arg0 : i32, i32
  }
}

</mosaic_0001>

<llo_original>
// kernel: tpu_custom_call.1
$region0: #{tpu_custom_call.1}
  #allocation0 [shape = 'u32[]', space=smem, size = 0x4, offset = 0x4, fixed_abs, tag = 'smem constant byte address 0x4 - core index']
  #allocation1 [shape = 'u32[72,128]{1,0:T(1,128)}', space=vmem, size = 0x9000, scoped, tag = 'internal scratch']
  %s0 = inlined_call_operand.vmem [shape: f32[2,8], index: 0, kind: input, shape index: {}]
  %s1 = inlined_call_operand.vmem [shape: f32[128,1], index: 1, kind: input, shape index: {}]
  %s2 = inlined_call_operand.vmem [shape: bf16[2,128,128], index: 2, kind: input, shape index: {}]
  %s3 = inlined_call_operand.vmem [shape: f32[128,8], index: 3, kind: input, shape index: {}]
  %s4 = inlined_call_operand.hbm [shape: f32[2,8], index: 4, kind: output, shape index: {}]
  %s5 = sld [smem:[#allocation0]]
  $region26: #{tpu_custom_call.1} parent=0
    _
  %s7 = ssub.s32 1, %s5
  %s8 = scalar_select 0, %s7, %s5
  $region1: #{tpu_custom_call.1} parent=0
    #allocation2 [shape = 'u8[1024]{0}', space=vmem, size = 0x400, scoped, tag = 'output window, operand 0, single buffered']
    #allocation3 [shape = 's32[1]{0}', space=sflag, size = 0x4, scoped, tag = 'scoped memory for tpu_custom_call.1']
    %9 = vsyncpa [#allocation3], 0
    // Predicated region
    $region2: #{tpu_custom_call.1} parent=1 // pred_check
      _
    $region3: #{tpu_custom_call.1} parent=1 // pred_check_branch
      %11 = sbr.rel (0) target = $region5
    $region4: #{tpu_custom_call.1} parent=1 // pred_region
      _
    $region5: #{tpu_custom_call.1} parent=1 // pred_fallthru
      _
    // Predicated region
    $region6: #{tpu_custom_call.1} parent=1 // pred_check
      _
    $region7: #{tpu_custom_call.1} parent=1 // pred_check_branch
      %13 = sbr.rel (0) target = $region9
    $region8: #{tpu_custom_call.1} parent=1 // pred_region
      _
    $region9: #{tpu_custom_call.1} parent=1 // pred_fallthru
      _
    // Predicated region
    $region10: #{tpu_custom_call.1} parent=1 // pred_check
      _
    $region11: #{tpu_custom_call.1} parent=1 // pred_check_branch
      %15 = sbr.rel (0) target = $region13
    $region12: #{tpu_custom_call.1} parent=1 // pred_region
      _
    $region13: #{tpu_custom_call.1} parent=1 // pred_fallthru
      _
    // Predicated region
    $region14: #{tpu_custom_call.1} parent=1 // pred_check
      _
    $region15: #{tpu_custom_call.1} parent=1 // pred_check_branch
      %17 = sbr.rel (0) target = $region17
    $region16: #{tpu_custom_call.1} parent=1 // pred_region
      _
    $region17: #{tpu_custom_call.1} parent=1 // pred_fallthru
      _
    %v18 = vld [vmem:[%s0 + $0x1] sm:$0x1]
    %v19 = vld [vmem:[%s3] sm:$0xff]
    %v20 = vld [vmem:[%s3 + $0x8] sm:$0xff]
    %v21 = vld [vmem:[%s3 + $0x10] sm:$0xff]
    %v22 = vld [vmem:[%s3 + $0x18] sm:$0xff]
    %v23 = vld [vmem:[%s3 + $0x20] sm:$0xff]
    %v24 = vld [vmem:[%s3 + $0x28] sm:$0xff]
    %v25 = vld [vmem:[%s3 + $0x30] sm:$0xff]
    %v26 = vld [vmem:[%s3 + $0x38] sm:$0xff]
    %v27 = vld [vmem:[%s3 + $0x40] sm:$0xff]
    %v28 = vld [vmem:[%s3 + $0x48] sm:$0xff]
    %v29 = vld [vmem:[%s3 + $0x50] sm:$0xff]
    %v30 = vld [vmem:[%s3 + $0x58] sm:$0xff]
    %v31 = vld [vmem:[%s3 + $0x60] sm:$0xff]
    %v32 = vld [vmem:[%s3 + $0x68] sm:$0xff]
    %v33 = vld [vmem:[%s3 + $0x70] sm:$0xff]
    %v34 = vld [vmem:[%s3 + $0x78] sm:$0xff]
    %v35 = vld [vmem:[%s3] sm:$0x1]
    %v36 = vld [vmem:[%s3 + $0x1] sm:$0x1]
    %v37 = vld [vmem:[%s1] sm:$0xff]
    %v38 = vld [vmem:[%s1 + $0x8] sm:$0xff]
    %v39 = vld [vmem:[%s1 + $0x10] sm:$0xff]
    %v40 = vld [vmem:[%s1 + $0x18] sm:$0xff]
    %v41 = vld [vmem:[%s1 + $0x20] sm:$0xff]
    %v42 = vld [vmem:[%s1 + $0x28] sm:$0xff]
    %v43 = vld [vmem:[%s1 + $0x30] sm:$0xff]
    %v44 = vld [vmem:[%s1 + $0x38] sm:$0xff]
    %v45 = vld [vmem:[%s1 + $0x40] sm:$0xff]
    %v46 = vld [vmem:[%s1 + $0x48] sm:$0xff]
    %v47 = vld [vmem:[%s1 + $0x50] sm:$0xff]
    %v48 = vld [vmem:[%s1 + $0x58] sm:$0xff]
    %v49 = vld [vmem:[%s1 + $0x60] sm:$0xff]
    %v50 = vld [vmem:[%s1 + $0x68] sm:$0xff]
    %v51 = vld [vmem:[%s1 + $0x70] sm:$0xff]
    %v52 = vld [vmem:[%s1 + $0x78] sm:$0xff]
    %v53 = vld [vmem:[%s0] sm:$0x1]
    %55 = vset.pattern.permute.xlu0 0
    %56 = vperm.xlu0 %55, %v37
    %v57 = vpop.permute.xlu0 %56
    %60 = vset.pattern.permute.xlu0 0
    %61 = vperm.xlu0 %60, %v38
    %v62 = vpop.permute.xlu0 %61
    %65 = vset.pattern.permute.xlu0 0
    %66 = vperm.xlu0 %65, %v39
    %v67 = vpop.permute.xlu0 %66
    %70 = vset.pattern.permute.xlu0 0
    %71 = vperm.xlu0 %70, %v40
    %v72 = vpop.permute.xlu0 %71
    %75 = vset.pattern.permute.xlu0 0
    %76 = vperm.xlu0 %75, %v41
    %v77 = vpop.permute.xlu0 %76
    %80 = vset.pattern.permute.xlu0 0
    %81 = vperm.xlu0 %80, %v42
    %v82 = vpop.permute.xlu0 %81
    %85 = vset.pattern.permute.xlu0 0
    %86 = vperm.xlu0 %85, %v43
    %v87 = vpop.permute.xlu0 %86
    %90 = vset.pattern.permute.xlu0 0
    %91 = vperm.xlu0 %90, %v44
    %v92 = vpop.permute.xlu0 %91
    %95 = vset.pattern.permute.xlu0 0
    %96 = vperm.xlu0 %95, %v45
    %v97 = vpop.permute.xlu0 %96
    %100 = vset.pattern.permute.xlu0 0
    %101 = vperm.xlu0 %100, %v46
    %v102 = vpop.permute.xlu0 %101
    %105 = vset.pattern.permute.xlu0 0
    %106 = vperm.xlu0 %105, %v47
    %v107 = vpop.permute.xlu0 %106
    %110 = vset.pattern.permute.xlu0 0
    %111 = vperm.xlu0 %110, %v48
    %v112 = vpop.permute.xlu0 %111
    %115 = vset.pattern.permute.xlu0 0
    %116 = vperm.xlu0 %115, %v49
    %v117 = vpop.permute.xlu0 %116
    %120 = vset.pattern.permute.xlu0 0
    %121 = vperm.xlu0 %120, %v50
    %v122 = vpop.permute.xlu0 %121
    %125 = vset.pattern.permute.xlu0 0
    %126 = vperm.xlu0 %125, %v51
    %v127 = vpop.permute.xlu0 %126
    %130 = vset.pattern.permute.xlu0 0
    %131 = vperm.xlu0 %130, %v52
    %v132 = vpop.permute.xlu0 %131
    %v134 = vperm.slane %v53, 0
    %v135 = vmul.f32 %v57, %v134
    %v136 = vmul.f32 %v62, %v134
    %v137 = vmul.f32 %v67, %v134
    %v138 = vmul.f32 %v72, %v134
    %v139 = vmul.f32 %v77, %v134
    %v140 = vmul.f32 %v82, %v134
    %v141 = vmul.f32 %v87, %v134
    %v142 = vmul.f32 %v92, %v134
    %v143 = vmul.f32 %v97, %v134
    %v144 = vmul.f32 %v102, %v134
    %v145 = vmul.f32 %v107, %v134
    %v146 = vmul.f32 %v112, %v134
    %v147 = vmul.f32 %v117, %v134
    %v148 = vmul.f32 %v122, %v134
    %v149 = vmul.f32 %v127, %v134
    %v150 = vmul.f32 %v132, %v134
    %152 = vset.pattern.permute.xlu0 0
    %153 = vperm.xlu0 %152, %v19
    %v154 = vpop.permute.xlu0 %153
    %157 = vset.pattern.permute.xlu0 0
    %158 = vperm.xlu0 %157, %v20
    %v159 = vpop.permute.xlu0 %158
    %162 = vset.pattern.permute.xlu0 0
    %163 = vperm.xlu0 %162, %v21
    %v164 = vpop.permute.xlu0 %163
    %167 = vset.pattern.permute.xlu0 0
    %168 = vperm.xlu0 %167, %v22
    %v169 = vpop.permute.xlu0 %168
    %172 = vset.pattern.permute.xlu0 0
    %173 = vperm.xlu0 %172, %v23
    %v174 = vpop.permute.xlu0 %173
    %177 = vset.pattern.permute.xlu0 0
    %178 = vperm.xlu0 %177, %v24
    %v179 = vpop.permute.xlu0 %178
    %182 = vset.pattern.permute.xlu0 0
    %183 = vperm.xlu0 %182, %v25
    %v184 = vpop.permute.xlu0 %183
    %187 = vset.pattern.permute.xlu0 0
    %188 = vperm.xlu0 %187, %v26
    %v189 = vpop.permute.xlu0 %188
    %192 = vset.pattern.permute.xlu0 0
    %193 = vperm.xlu0 %192, %v27
    %v194 = vpop.permute.xlu0 %193
    %197 = vset.pattern.permute.xlu0 0
    %198 = vperm.xlu0 %197, %v28
    %v199 = vpop.permute.xlu0 %198
    %202 = vset.pattern.permute.xlu0 0
    %203 = vperm.xlu0 %202, %v29
    %v204 = vpop.permute.xlu0 %203
    %207 = vset.pattern.permute.xlu0 0
    %208 = vperm.xlu0 %207, %v30
    %v209 = vpop.permute.xlu0 %208
    %212 = vset.pattern.permute.xlu0 0
    %213 = vperm.xlu0 %212, %v31
    %v214 = vpop.permute.xlu0 %213
    %217 = vset.pattern.permute.xlu0 0
    %218 = vperm.xlu0 %217, %v32
    %v219 = vpop.permute.xlu0 %218
    %222 = vset.pattern.permute.xlu0 0
    %223 = vperm.xlu0 %222, %v33
    %v224 = vpop.permute.xlu0 %223
    %227 = vset.pattern.permute.xlu0 0
    %228 = vperm.xlu0 %227, %v34
    %v229 = vpop.permute.xlu0 %228
    %v231 = vadd.f32 %v135, %v154
    %v232 = vadd.f32 %v136, %v159
    %v233 = vadd.f32 %v137, %v164
    %v234 = vadd.f32 %v138, %v169
    %v235 = vadd.f32 %v139, %v174
    %v236 = vadd.f32 %v140, %v179
    %v237 = vadd.f32 %v141, %v184
    %v238 = vadd.f32 %v142, %v189
    %v239 = vadd.f32 %v143, %v194
    %v240 = vadd.f32 %v144, %v199
    %v241 = vadd.f32 %v145, %v204
    %v242 = vadd.f32 %v146, %v209
    %v243 = vadd.f32 %v147, %v214
    %v244 = vadd.f32 %v148, %v219
    %v245 = vadd.f32 %v149, %v224
    %v246 = vadd.f32 %v150, %v229
    %vm247 = vcmp.gt.f32.partialorder %v231, 0.0
    %vm248 = vcmp.gt.f32.partialorder %v232, 0.0
    %vm249 = vcmp.gt.f32.partialorder %v233, 0.0
    %vm250 = vcmp.gt.f32.partialorder %v234, 0.0
    %vm251 = vcmp.gt.f32.partialorder %v235, 0.0
    %vm252 = vcmp.gt.f32.partialorder %v236, 0.0
    %vm253 = vcmp.gt.f32.partialorder %v237, 0.0
    %vm254 = vcmp.gt.f32.partialorder %v238, 0.0
    %vm255 = vcmp.gt.f32.partialorder %v239, 0.0
    %vm256 = vcmp.gt.f32.partialorder %v240, 0.0
    %vm257 = vcmp.gt.f32.partialorder %v241, 0.0
    %vm258 = vcmp.gt.f32.partialorder %v242, 0.0
    %vm259 = vcmp.gt.f32.partialorder %v243, 0.0
    %vm260 = vcmp.gt.f32.partialorder %v244, 0.0
    %vm261 = vcmp.gt.f32.partialorder %v245, 0.0
    %vm262 = vcmp.gt.f32.partialorder %v246, 0.0
    %v263 = vmul.f32 %v231, 0.01
    %v264 = vmul.f32 %v232, 0.01
    %v265 = vmul.f32 %v233, 0.01
    %v266 = vmul.f32 %v234, 0.01
    %v267 = vmul.f32 %v235, 0.01
    %v268 = vmul.f32 %v236, 0.01
    %v269 = vmul.f32 %v237, 0.01
    %v270 = vmul.f32 %v238, 0.01
    %v271 = vmul.f32 %v239, 0.01
    %v272 = vmul.f32 %v240, 0.01
    %v273 = vmul.f32 %v241, 0.01
    %v274 = vmul.f32 %v242, 0.01
    %v275 = vmul.f32 %v243, 0.01
    %v276 = vmul.f32 %v244, 0.01
    %v277 = vmul.f32 %v245, 0.01
    %v278 = vmul.f32 %v246, 0.01
    %v279 = vsel %vm247, %v231, %v263
    %v280 = vsel %vm248, %v232, %v264
    %v281 = vsel %vm249, %v233, %v265
    %v282 = vsel %vm250, %v234, %v266
    %v283 = vsel %vm251, %v235, %v267
    %v284 = vsel %vm252, %v236, %v268
    %v285 = vsel %vm253, %v237, %v269
    %v286 = vsel %vm254, %v238, %v270
    %v287 = vsel %vm255, %v239, %v271
    %v288 = vsel %vm256, %v240, %v272
    %v289 = vsel %vm257, %v241, %v273
    %v290 = vsel %vm258, %v242, %v274
    %v291 = vsel %vm259, %v243, %v275
    %v292 = vsel %vm260, %v244, %v276
    %v293 = vsel %vm261, %v245, %v277
    %v294 = vsel %vm262, %v246, %v278
    %v295 = vld [vmem:[%s2] sm:$0xf]
    %v296 = vld [vmem:[%s2 + $0x4] sm:$0xf]
    %v297 = vld [vmem:[%s2 + $0x8] sm:$0xf]
    %v298 = vld [vmem:[%s2 + $0xc] sm:$0xf]
    %v299 = vld [vmem:[%s2 + $0x10] sm:$0xf]
    %v300 = vld [vmem:[%s2 + $0x14] sm:$0xf]
    %v301 = vld [vmem:[%s2 + $0x18] sm:$0xf]
    %v302 = vld [vmem:[%s2 + $0x1c] sm:$0xf]
    %v303 = vld [vmem:[%s2 + $0x20] sm:$0xf]
    %v304 = vld [vmem:[%s2 + $0x24] sm:$0xf]
    %v305 = vld [vmem:[%s2 + $0x28] sm:$0xf]
    %v306 = vld [vmem:[%s2 + $0x2c] sm:$0xf]
    %v307 = vld [vmem:[%s2 + $0x30] sm:$0xf]
    %v308 = vld [vmem:[%s2 + $0x34] sm:$0xf]
    %v309 = vld [vmem:[%s2 + $0x38] sm:$0xf]
    %v310 = vld [vmem:[%s2 + $0x3c] sm:$0xf]
    %v311 = vpack.c.bf16 %v280, %v279
    %v312 = vpack.c.bf16 %v282, %v281
    %v313 = vpack.c.bf16 %v284, %v283
    %v314 = vpack.c.bf16 %v286, %v285
    %v315 = vpack.c.bf16 %v288, %v287
    %v316 = vpack.c.bf16 %v290, %v289
    %v317 = vpack.c.bf16 %v292, %v291
    %v318 = vpack.c.bf16 %v294, %v293
    %319 = vset.pattern.permute.xlu0 1
    %320 = vperm.xlu0 %319, %v19
    %v321 = vpop.permute.xlu0 %320
    %323 = vset.pattern.permute.xlu0 1
    %324 = vperm.xlu0 %323, %v20
    %v325 = vpop.permute.xlu0 %324
    %327 = vset.pattern.permute.xlu0 1
    %328 = vperm.xlu0 %327, %v21
    %v329 = vpop.permute.xlu0 %328
    %331 = vset.pattern.permute.xlu0 1
    %332 = vperm.xlu0 %331, %v22
    %v333 = vpop.permute.xlu0 %332
    %335 = vset.pattern.permute.xlu0 1
    %336 = vperm.xlu0 %335, %v23
    %v337 = vpop.permute.xlu0 %336
    %339 = vset.pattern.permute.xlu0 1
    %340 = vperm.xlu0 %339, %v24
    %v341 = vpop.permute.xlu0 %340
    %343 = vset.pattern.permute.xlu0 1
    %344 = vperm.xlu0 %343, %v25
    %v345 = vpop.permute.xlu0 %344
    %347 = vset.pattern.permute.xlu0 1
    %348 = vperm.xlu0 %347, %v26
    %v349 = vpop.permute.xlu0 %348
    %351 = vset.pattern.permute.xlu0 1
    %352 = vperm.xlu0 %351, %v27
    %v353 = vpop.permute.xlu0 %352
    %355 = vset.pattern.permute.xlu0 1
    %356 = vperm.xlu0 %355, %v28
    %v357 = vpop.permute.xlu0 %356
    %359 = vset.pattern.permute.xlu0 1
    %360 = vperm.xlu0 %359, %v29
    %v361 = vpop.permute.xlu0 %360
    %363 = vset.pattern.permute.xlu0 1
    %364 = vperm.xlu0 %363, %v30
    %v365 = vpop.permute.xlu0 %364
    %367 = vset.pattern.permute.xlu0 1
    %368 = vperm.xlu0 %367, %v31
    %v369 = vpop.permute.xlu0 %368
    %371 = vset.pattern.permute.xlu0 1
    %372 = vperm.xlu0 %371, %v32
    %v373 = vpop.permute.xlu0 %372
    %375 = vset.pattern.permute.xlu0 1
    %376 = vperm.xlu0 %375, %v33
    %v377 = vpop.permute.xlu0 %376
    %379 = vset.pattern.permute.xlu0 1
    %380 = vperm.xlu0 %379, %v34
    %v381 = vpop.permute.xlu0 %380
    %v383 = vperm.slane %v18, 0
    %v384 = vmul.f32 %v321, %v383
    %v385 = vmul.f32 %v325, %v383
    %v386 = vmul.f32 %v329, %v383
    %v387 = vmul.f32 %v333, %v383
    %v388 = vmul.f32 %v337, %v383
    %v389 = vmul.f32 %v341, %v383
    %v390 = vmul.f32 %v345, %v383
    %v391 = vmul.f32 %v349, %v383
    %v392 = vmul.f32 %v353, %v383
    %v393 = vmul.f32 %v357, %v383
    %v394 = vmul.f32 %v361, %v383
    %v395 = vmul.f32 %v365, %v383
    %v396 = vmul.f32 %v369, %v383
    %v397 = vmul.f32 %v373, %v383
    %v398 = vmul.f32 %v377, %v383
    %v399 = vmul.f32 %v381, %v383
    %v416 = vunpack.c.l.b16 %v295
    %v417 = vunpack.c.l.b16 %v296
    %v418 = vunpack.c.l.b16 %v297
    %v419 = vunpack.c.l.b16 %v298
    %v420 = vunpack.c.l.b16 %v299
    %v421 = vunpack.c.l.b16 %v300
    %v422 = vunpack.c.l.b16 %v301
    %v423 = vunpack.c.l.b16 %v302
    %v424 = vunpack.c.l.b16 %v303
    %v425 = vunpack.c.l.b16 %v304
    %v426 = vunpack.c.l.b16 %v305
    %v427 = vunpack.c.l.b16 %v306
    %v428 = vunpack.c.l.b16 %v307
    %v429 = vunpack.c.l.b16 %v308
    %v430 = vunpack.c.l.b16 %v309
    %v431 = vunpack.c.l.b16 %v310
    %v432 = vpack.c.b16 %v417, %v416
    %v433 = vpack.c.b16 %v419, %v418
    %v434 = vpack.c.b16 %v421, %v420
    %v435 = vpack.c.b16 %v423, %v422
    %v436 = vpack.c.b16 %v425, %v424
    %v437 = vpack.c.b16 %v427, %v426
    %v438 = vpack.c.b16 %v429, %v428
    %v439 = vpack.c.b16 %v431, %v430
    %448 = vmatpush.bf16.msra.mxu0 %v318
    %449 = vmatpush.bf16.msra.mxu0 %v317
    %450 = vmatpush.bf16.msra.mxu0 %v316
    %451 = vmatpush.bf16.msra.mxu0 %v315
    %452 = vmatpush.bf16.msra.mxu0 %v314
    %453 = vmatpush.bf16.msra.mxu0 %v313
    %454 = vmatpush.bf16.msra.mxu0 %v312
    %455 = vmatpush.bf16.msra.mxu0 %v311
    %456 = vmatmul.bf16.gmra.mxu0 %v432
    %v457 = vpop.f32.mrf.mxu0
    %v458 = vadd.f32 %v384, %v457
    %v459 = vpop.f32.mrf.mxu0
    %v460 = vadd.f32 %v385, %v459
    %461 = vmatmul.bf16.gmra.mxu0 %v433
    %v462 = vpop.f32.mrf.mxu0
    %v463 = vadd.f32 %v386, %v462
    %v464 = vpop.f32.mrf.mxu0
    %v465 = vadd.f32 %v387, %v464
    %466 = vmatmul.bf16.gmra.mxu0 %v434
    %v467 = vpop.f32.mrf.mxu0
    %v468 = vadd.f32 %v388, %v467
    %v469 = vpop.f32.mrf.mxu0
    %v470 = vadd.f32 %v389, %v469
    %471 = vmatmul.bf16.gmra.mxu0 %v435
    %v472 = vpop.f32.mrf.mxu0
    %v473 = vadd.f32 %v390, %v472
    %v474 = vpop.f32.mrf.mxu0
    %v475 = vadd.f32 %v391, %v474
    %476 = vmatmul.bf16.gmra.mxu0 %v436
    %v477 = vpop.f32.mrf.mxu0
    %v478 = vadd.f32 %v392, %v477
    %v479 = vpop.f32.mrf.mxu0
    %v480 = vadd.f32 %v393, %v479
    %481 = vmatmul.bf16.gmra.mxu0 %v437
    %v482 = vpop.f32.mrf.mxu0
    %v483 = vadd.f32 %v394, %v482
    %v484 = vpop.f32.mrf.mxu0
    %v485 = vadd.f32 %v395, %v484
    %486 = vmatmul.bf16.gmra.mxu0 %v438
    %v487 = vpop.f32.mrf.mxu0
    %v488 = vadd.f32 %v396, %v487
    %v489 = vpop.f32.mrf.mxu0
    %v490 = vadd.f32 %v397, %v489
    %491 = vmatmul.bf16.gmra.mxu0 %v439
    %v492 = vpop.f32.mrf.mxu0
    %v493 = vadd.f32 %v398, %v492
    %v494 = vpop.f32.mrf.mxu0
    %v495 = vadd.f32 %v399, %v494
    %496 = vdwg.mxu0
    %497 = vset.pattern.permute.xlu0 2
    %498 = vperm.xlu0 %497, %v19
    %v499 = vpop.permute.xlu0 %498
    %501 = vset.pattern.permute.xlu0 2
    %502 = vperm.xlu0 %501, %v20
    %v503 = vpop.permute.xlu0 %502
    %505 = vset.pattern.permute.xlu0 2
    %506 = vperm.xlu0 %505, %v21
    %v507 = vpop.permute.xlu0 %506
    %509 = vset.pattern.permute.xlu0 2
    %510 = vperm.xlu0 %509, %v22
    %v511 = vpop.permute.xlu0 %510
    %513 = vset.pattern.permute.xlu0 2
    %514 = vperm.xlu0 %513, %v23
    %v515 = vpop.permute.xlu0 %514
    %517 = vset.pattern.permute.xlu0 2
    %518 = vperm.xlu0 %517, %v24
    %v519 = vpop.permute.xlu0 %518
    %521 = vset.pattern.permute.xlu0 2
    %522 = vperm.xlu0 %521, %v25
    %v523 = vpop.permute.xlu0 %522
    %525 = vset.pattern.permute.xlu0 2
    %526 = vperm.xlu0 %525, %v26
    %v527 = vpop.permute.xlu0 %526
    %529 = vset.pattern.permute.xlu0 2
    %530 = vperm.xlu0 %529, %v27
    %v531 = vpop.permute.xlu0 %530
    %533 = vset.pattern.permute.xlu0 2
    %534 = vperm.xlu0 %533, %v28
    %v535 = vpop.permute.xlu0 %534
    %537 = vset.pattern.permute.xlu0 2
    %538 = vperm.xlu0 %537, %v29
    %v539 = vpop.permute.xlu0 %538
    %541 = vset.pattern.permute.xlu0 2
    %542 = vperm.xlu0 %541, %v30
    %v543 = vpop.permute.xlu0 %542
    %545 = vset.pattern.permute.xlu0 2
    %546 = vperm.xlu0 %545, %v31
    %v547 = vpop.permute.xlu0 %546
    %549 = vset.pattern.permute.xlu0 2
    %550 = vperm.xlu0 %549, %v32
    %v551 = vpop.permute.xlu0 %550
    %553 = vset.pattern.permute.xlu0 2
    %554 = vperm.xlu0 %553, %v33
    %v555 = vpop.permute.xlu0 %554
    %557 = vset.pattern.permute.xlu0 2
    %558 = vperm.xlu0 %557, %v34
    %v559 = vpop.permute.xlu0 %558
    %v561 = vadd.f32 %v458, %v499
    %v562 = vadd.f32 %v460, %v503
    %v563 = vadd.f32 %v463, %v507
    %v564 = vadd.f32 %v465, %v511
    %v565 = vadd.f32 %v468, %v515
    %v566 = vadd.f32 %v470, %v519
    %v567 = vadd.f32 %v473, %v523
    %v568 = vadd.f32 %v475, %v527
    %v569 = vadd.f32 %v478, %v531
    %v570 = vadd.f32 %v480, %v535
    %v571 = vadd.f32 %v483, %v539
    %v572 = vadd.f32 %v485, %v543
    %v573 = vadd.f32 %v488, %v547
    %v574 = vadd.f32 %v490, %v551
    %v575 = vadd.f32 %v493, %v555
    %v576 = vadd.f32 %v495, %v559
    %vm577 = vcmp.gt.f32.partialorder %v561, 0.0
    %vm578 = vcmp.gt.f32.partialorder %v562, 0.0
    %vm579 = vcmp.gt.f32.partialorder %v563, 0.0
    %vm580 = vcmp.gt.f32.partialorder %v564, 0.0
    %vm581 = vcmp.gt.f32.partialorder %v565, 0.0
    %vm582 = vcmp.gt.f32.partialorder %v566, 0.0
    %vm583 = vcmp.gt.f32.partialorder %v567, 0.0
    %vm584 = vcmp.gt.f32.partialorder %v568, 0.0
    %vm585 = vcmp.gt.f32.partialorder %v569, 0.0
    %vm586 = vcmp.gt.f32.partialorder %v570, 0.0
    %vm587 = vcmp.gt.f32.partialorder %v571, 0.0
    %vm588 = vcmp.gt.f32.partialorder %v572, 0.0
    %vm589 = vcmp.gt.f32.partialorder %v573, 0.0
    %vm590 = vcmp.gt.f32.partialorder %v574, 0.0
    %vm591 = vcmp.gt.f32.partialorder %v575, 0.0
    %vm592 = vcmp.gt.f32.partialorder %v576, 0.0
    %v593 = vmul.f32 %v561, 0.01
    %v594 = vmul.f32 %v562, 0.01
    %v595 = vmul.f32 %v563, 0.01
    %v596 = vmul.f32 %v564, 0.01
    %v597 = vmul.f32 %v565, 0.01
    %v598 = vmul.f32 %v566, 0.01
    %v599 = vmul.f32 %v567, 0.01
    %v600 = vmul.f32 %v568, 0.01
    %v601 = vmul.f32 %v569, 0.01
    %v602 = vmul.f32 %v570, 0.01
    %v603 = vmul.f32 %v571, 0.01
    %v604 = vmul.f32 %v572, 0.01
    %v605 = vmul.f32 %v573, 0.01
    %v606 = vmul.f32 %v574, 0.01
    %v607 = vmul.f32 %v575, 0.01
    %v608 = vmul.f32 %v576, 0.01
    %v609 = vsel %vm577, %v561, %v593
    %v610 = vsel %vm578, %v562, %v594
    %v611 = vsel %vm579, %v563, %v595
    %v612 = vsel %vm580, %v564, %v596
    %v613 = vsel %vm581, %v565, %v597
    %v614 = vsel %vm582, %v566, %v598
    %v615 = vsel %vm583, %v567, %v599
    %v616 = vsel %vm584, %v568, %v600
    %v617 = vsel %vm585, %v569, %v601
    %v618 = vsel %vm586, %v570, %v602
    %v619 = vsel %vm587, %v571, %v603
    %v620 = vsel %vm588, %v572, %v604
    %v621 = vsel %vm589, %v573, %v605
    %v622 = vsel %vm590, %v574, %v606
    %v623 = vsel %vm591, %v575, %v607
    %v624 = vsel %vm592, %v576, %v608
    %s625 = scalar_lea.vmem %s2, 64
    %v626 = vld [vmem:[%s625] sm:$0xf]
    %v627 = vld [vmem:[%s625 + $0x4] sm:$0xf]
    %v628 = vld [vmem:[%s625 + $0x8] sm:$0xf]
    %v629 = vld [vmem:[%s625 + $0xc] sm:$0xf]
    %v630 = vld [vmem:[%s625 + $0x10] sm:$0xf]
    %v631 = vld [vmem:[%s625 + $0x14] sm:$0xf]
    %v632 = vld [vmem:[%s625 + $0x18] sm:$0xf]
    %v633 = vld [vmem:[%s625 + $0x1c] sm:$0xf]
    %v634 = vld [vmem:[%s625 + $0x20] sm:$0xf]
    %v635 = vld [vmem:[%s625 + $0x24] sm:$0xf]
    %v636 = vld [vmem:[%s625 + $0x28] sm:$0xf]
    %v637 = vld [vmem:[%s625 + $0x2c] sm:$0xf]
    %v638 = vld [vmem:[%s625 + $0x30] sm:$0xf]
    %v639 = vld [vmem:[%s625 + $0x34] sm:$0xf]
    %v640 = vld [vmem:[%s625 + $0x38] sm:$0xf]
    %v641 = vld [vmem:[%s625 + $0x3c] sm:$0xf]
    %v642 = vpack.c.bf16 %v610, %v609
    %v643 = vpack.c.bf16 %v612, %v611
    %v644 = vpack.c.bf16 %v614, %v613
    %v645 = vpack.c.bf16 %v616, %v615
    %v646 = vpack.c.bf16 %v618, %v617
    %v647 = vpack.c.bf16 %v620, %v619
    %v648 = vpack.c.bf16 %v622, %v621
    %v649 = vpack.c.bf16 %v624, %v623
    %650 = vset.pattern.permute.xlu0 3
    %651 = vperm.xlu0 %650, %v19
    %v652 = vpop.permute.xlu0 %651
    %654 = vset.pattern.permute.xlu0 3
    %655 = vperm.xlu0 %654, %v20
    %v656 = vpop.permute.xlu0 %655
    %658 = vset.pattern.permute.xlu0 3
    %659 = vperm.xlu0 %658, %v21
    %v660 = vpop.permute.xlu0 %659
    %662 = vset.pattern.permute.xlu0 3
    %663 = vperm.xlu0 %662, %v22
    %v664 = vpop.permute.xlu0 %663
    %666 = vset.pattern.permute.xlu0 3
    %667 = vperm.xlu0 %666, %v23
    %v668 = vpop.permute.xlu0 %667
    %670 = vset.pattern.permute.xlu0 3
    %671 = vperm.xlu0 %670, %v24
    %v672 = vpop.permute.xlu0 %671
    %674 = vset.pattern.permute.xlu0 3
    %675 = vperm.xlu0 %674, %v25
    %v676 = vpop.permute.xlu0 %675
    %678 = vset.pattern.permute.xlu0 3
    %679 = vperm.xlu0 %678, %v26
    %v680 = vpop.permute.xlu0 %679
    %682 = vset.pattern.permute.xlu0 3
    %683 = vperm.xlu0 %682, %v27
    %v684 = vpop.permute.xlu0 %683
    %686 = vset.pattern.permute.xlu0 3
    %687 = vperm.xlu0 %686, %v28
    %v688 = vpop.permute.xlu0 %687
    %690 = vset.pattern.permute.xlu0 3
    %691 = vperm.xlu0 %690, %v29
    %v692 = vpop.permute.xlu0 %691
    %694 = vset.pattern.permute.xlu0 3
    %695 = vperm.xlu0 %694, %v30
    %v696 = vpop.permute.xlu0 %695
    %698 = vset.pattern.permute.xlu0 3
    %699 = vperm.xlu0 %698, %v31
    %v700 = vpop.permute.xlu0 %699
    %702 = vset.pattern.permute.xlu0 3
    %703 = vperm.xlu0 %702, %v32
    %v704 = vpop.permute.xlu0 %703
    %706 = vset.pattern.permute.xlu0 3
    %707 = vperm.xlu0 %706, %v33
    %v708 = vpop.permute.xlu0 %707
    %710 = vset.pattern.permute.xlu0 3
    %711 = vperm.xlu0 %710, %v34
    %v712 = vpop.permute.xlu0 %711
    %v714 = vmul.f32 %v652, %v383
    %v715 = vmul.f32 %v656, %v383
    %v716 = vmul.f32 %v660, %v383
    %v717 = vmul.f32 %v664, %v383
    %v718 = vmul.f32 %v668, %v383
    %v719 = vmul.f32 %v672, %v383
    %v720 = vmul.f32 %v676, %v383
    %v721 = vmul.f32 %v680, %v383
    %v722 = vmul.f32 %v684, %v383
    %v723 = vmul.f32 %v688, %v383
    %v724 = vmul.f32 %v692, %v383
    %v725 = vmul.f32 %v696, %v383
    %v726 = vmul.f32 %v700, %v383
    %v727 = vmul.f32 %v704, %v383
    %v728 = vmul.f32 %v708, %v383
    %v729 = vmul.f32 %v712, %v383
    %v746 = vunpack.c.l.b16 %v626
    %v747 = vunpack.c.l.b16 %v627
    %v748 = vunpack.c.l.b16 %v628
    %v749 = vunpack.c.l.b16 %v629
    %v750 = vunpack.c.l.b16 %v630
    %v751 = vunpack.c.l.b16 %v631
    %v752 = vunpack.c.l.b16 %v632
    %v753 = vunpack.c.l.b16 %v633
    %v754 = vunpack.c.l.b16 %v634
    %v755 = vunpack.c.l.b16 %v635
    %v756 = vunpack.c.l.b16 %v636
    %v757 = vunpack.c.l.b16 %v637
    %v758 = vunpack.c.l.b16 %v638
    %v759 = vunpack.c.l.b16 %v639
    %v760 = vunpack.c.l.b16 %v640
    %v761 = vunpack.c.l.b16 %v641
    %v762 = vpack.c.b16 %v747, %v746
    %v763 = vpack.c.b16 %v749, %v748
    %v764 = vpack.c.b16 %v751, %v750
    %v765 = vpack.c.b16 %v753, %v752
    %v766 = vpack.c.b16 %v755, %v754
    %v767 = vpack.c.b16 %v757, %v756
    %v768 = vpack.c.b16 %v759, %v758
    %v769 = vpack.c.b16 %v761, %v760
    %778 = vmatpush.bf16.msra.mxu0 %v649
    %779 = vmatpush.bf16.msra.mxu0 %v648
    %780 = vmatpush.bf16.msra.mxu0 %v647
    %781 = vmatpush.bf16.msra.mxu0 %v646
    %782 = vmatpush.bf16.msra.mxu0 %v645
    %783 = vmatpush.bf16.msra.mxu0 %v644
    %784 = vmatpush.bf16.msra.mxu0 %v643
    %785 = vmatpush.bf16.msra.mxu0 %v642
    %786 = vmatmul.bf16.gmra.mxu0 %v762
    %v787 = vpop.f32.mrf.mxu0
    %v788 = vadd.f32 %v714, %v787
    %v789 = vpop.f32.mrf.mxu0
    %v790 = vadd.f32 %v715, %v789
    %791 = vmatmul.bf16.gmra.mxu0 %v763
    %v792 = vpop.f32.mrf.mxu0
    %v793 = vadd.f32 %v716, %v792
    %v794 = vpop.f32.mrf.mxu0
    %v795 = vadd.f32 %v717, %v794
    %796 = vmatmul.bf16.gmra.mxu0 %v764
    %v797 = vpop.f32.mrf.mxu0
    %v798 = vadd.f32 %v718, %v797
    %v799 = vpop.f32.mrf.mxu0
    %v800 = vadd.f32 %v719, %v799
    %801 = vmatmul.bf16.gmra.mxu0 %v765
    %v802 = vpop.f32.mrf.mxu0
    %v803 = vadd.f32 %v720, %v802
    %v804 = vpop.f32.mrf.mxu0
    %v805 = vadd.f32 %v721, %v804
    %806 = vmatmul.bf16.gmra.mxu0 %v766
    %v807 = vpop.f32.mrf.mxu0
    %v808 = vadd.f32 %v722, %v807
    %v809 = vpop.f32.mrf.mxu0
    %v810 = vadd.f32 %v723, %v809
    %811 = vmatmul.bf16.gmra.mxu0 %v767
    %v812 = vpop.f32.mrf.mxu0
    %v813 = vadd.f32 %v724, %v812
    %v814 = vpop.f32.mrf.mxu0
    %v815 = vadd.f32 %v725, %v814
    %816 = vmatmul.bf16.gmra.mxu0 %v768
    %v817 = vpop.f32.mrf.mxu0
    %v818 = vadd.f32 %v726, %v817
    %v819 = vpop.f32.mrf.mxu0
    %v820 = vadd.f32 %v727, %v819
    %821 = vmatmul.bf16.gmra.mxu0 %v769
    %v822 = vpop.f32.mrf.mxu0
    %v823 = vadd.f32 %v728, %v822
    %v824 = vpop.f32.mrf.mxu0
    %v825 = vadd.f32 %v729, %v824
    %826 = vdwg.mxu0
    %827 = vset.pattern.permute.xlu0 4
    %828 = vperm.xlu0 %827, %v19
    %v829 = vpop.permute.xlu0 %828
    %831 = vset.pattern.permute.xlu0 4
    %832 = vperm.xlu0 %831, %v20
    %v833 = vpop.permute.xlu0 %832
    %835 = vset.pattern.permute.xlu0 4
    %836 = vperm.xlu0 %835, %v21
    %v837 = vpop.permute.xlu0 %836
    %839 = vset.pattern.permute.xlu0 4
    %840 = vperm.xlu0 %839, %v22
    %v841 = vpop.permute.xlu0 %840
    %843 = vset.pattern.permute.xlu0 4
    %844 = vperm.xlu0 %843, %v23
    %v845 = vpop.permute.xlu0 %844
    %847 = vset.pattern.permute.xlu0 4
    %848 = vperm.xlu0 %847, %v24
    %v849 = vpop.permute.xlu0 %848
    %851 = vset.pattern.permute.xlu0 4
    %852 = vperm.xlu0 %851, %v25
    %v853 = vpop.permute.xlu0 %852
    %855 = vset.pattern.permute.xlu0 4
    %856 = vperm.xlu0 %855, %v26
    %v857 = vpop.permute.xlu0 %856
    %859 = vset.pattern.permute.xlu0 4
    %860 = vperm.xlu0 %859, %v27
    %v861 = vpop.permute.xlu0 %860
    %863 = vset.pattern.permute.xlu0 4
    %864 = vperm.xlu0 %863, %v28
    %v865 = vpop.permute.xlu0 %864
    %867 = vset.pattern.permute.xlu0 4
    %868 = vperm.xlu0 %867, %v29
    %v869 = vpop.permute.xlu0 %868
    %871 = vset.pattern.permute.xlu0 4
    %872 = vperm.xlu0 %871, %v30
    %v873 = vpop.permute.xlu0 %872
    %875 = vset.pattern.permute.xlu0 4
    %876 = vperm.xlu0 %875, %v31
    %v877 = vpop.permute.xlu0 %876
    %879 = vset.pattern.permute.xlu0 4
    %880 = vperm.xlu0 %879, %v32
    %v881 = vpop.permute.xlu0 %880
    %883 = vset.pattern.permute.xlu0 4
    %884 = vperm.xlu0 %883, %v33
    %v885 = vpop.permute.xlu0 %884
    %887 = vset.pattern.permute.xlu0 4
    %888 = vperm.xlu0 %887, %v34
    %v889 = vpop.permute.xlu0 %888
    %v891 = vadd.f32 %v788, %v829
    %v892 = vadd.f32 %v790, %v833
    %v893 = vadd.f32 %v793, %v837
    %v894 = vadd.f32 %v795, %v841
    %v895 = vadd.f32 %v798, %v845
    %v896 = vadd.f32 %v800, %v849
    %v897 = vadd.f32 %v803, %v853
    %v898 = vadd.f32 %v805, %v857
    %v899 = vadd.f32 %v808, %v861
    %v900 = vadd.f32 %v810, %v865
    %v901 = vadd.f32 %v813, %v869
    %v902 = vadd.f32 %v815, %v873
    %v903 = vadd.f32 %v818, %v877
    %v904 = vadd.f32 %v820, %v881
    %v905 = vadd.f32 %v823, %v885
    %v906 = vadd.f32 %v825, %v889
    %vm907 = vcmp.gt.f32.partialorder %v891, 0.0
    %vm908 = vcmp.gt.f32.partialorder %v892, 0.0
    %vm909 = vcmp.gt.f32.partialorder %v893, 0.0
    %vm910 = vcmp.gt.f32.partialorder %v894, 0.0
    %vm911 = vcmp.gt.f32.partialorder %v895, 0.0
    %vm912 = vcmp.gt.f32.partialorder %v896, 0.0
    %vm913 = vcmp.gt.f32.partialorder %v897, 0.0
    %vm914 = vcmp.gt.f32.partialorder %v898, 0.0
    %vm915 = vcmp.gt.f32.partialorder %v899, 0.0
    %vm916 = vcmp.gt.f32.partialorder %v900, 0.0
    %vm917 = vcmp.gt.f32.partialorder %v901, 0.0
    %vm918 = vcmp.gt.f32.partialorder %v902, 0.0
    %vm919 = vcmp.gt.f32.partialorder %v903, 0.0
    %vm920 = vcmp.gt.f32.partialorder %v904, 0.0
    %vm921 = vcmp.gt.f32.partialorder %v905, 0.0
    %vm922 = vcmp.gt.f32.partialorder %v906, 0.0
    %v923 = vmul.f32 %v891, 0.01
    %v924 = vmul.f32 %v892, 0.01
    %v925 = vmul.f32 %v893, 0.01
    %v926 = vmul.f32 %v894, 0.01
    %v927 = vmul.f32 %v895, 0.01
    %v928 = vmul.f32 %v896, 0.01
    %v929 = vmul.f32 %v897, 0.01
    %v930 = vmul.f32 %v898, 0.01
    %v931 = vmul.f32 %v899, 0.01
    %v932 = vmul.f32 %v900, 0.01
    %v933 = vmul.f32 %v901, 0.01
    %v934 = vmul.f32 %v902, 0.01
    %v935 = vmul.f32 %v903, 0.01
    %v936 = vmul.f32 %v904, 0.01
    %v937 = vmul.f32 %v905, 0.01
    %v938 = vmul.f32 %v906, 0.01
    %v939 = vsel %vm907, %v891, %v923
    %v940 = vsel %vm908, %v892, %v924
    %v941 = vsel %vm909, %v893, %v925
    %v942 = vsel %vm910, %v894, %v926
    %v943 = vsel %vm911, %v895, %v927
    %v944 = vsel %vm912, %v896, %v928
    %v945 = vsel %vm913, %v897, %v929
    %v946 = vsel %vm914, %v898, %v930
    %v947 = vsel %vm915, %v899, %v931
    %v948 = vsel %vm916, %v900, %v932
    %v949 = vsel %vm917, %v901, %v933
    %v950 = vsel %vm918, %v902, %v934
    %v951 = vsel %vm919, %v903, %v935
    %v952 = vsel %vm920, %v904, %v936
    %v953 = vsel %vm921, %v905, %v937
    %v954 = vsel %vm922, %v906, %v938
    %955 = vset.pattern.permute.xlu0 5
    %956 = vperm.xlu0 %955, %v19
    %v957 = vpop.permute.xlu0 %956
    %959 = vset.pattern.permute.xlu0 5
    %960 = vperm.xlu0 %959, %v20
    %v961 = vpop.permute.xlu0 %960
    %963 = vset.pattern.permute.xlu0 5
    %964 = vperm.xlu0 %963, %v21
    %v965 = vpop.permute.xlu0 %964
    %967 = vset.pattern.permute.xlu0 5
    %968 = vperm.xlu0 %967, %v22
    %v969 = vpop.permute.xlu0 %968
    %971 = vset.pattern.permute.xlu0 5
    %972 = vperm.xlu0 %971, %v23
    %v973 = vpop.permute.xlu0 %972
    %975 = vset.pattern.permute.xlu0 5
    %976 = vperm.xlu0 %975, %v24
    %v977 = vpop.permute.xlu0 %976
    %979 = vset.pattern.permute.xlu0 5
    %980 = vperm.xlu0 %979, %v25
    %v981 = vpop.permute.xlu0 %980
    %983 = vset.pattern.permute.xlu0 5
    %984 = vperm.xlu0 %983, %v26
    %v985 = vpop.permute.xlu0 %984
    %987 = vset.pattern.permute.xlu0 5
    %988 = vperm.xlu0 %987, %v27
    %v989 = vpop.permute.xlu0 %988
    %991 = vset.pattern.permute.xlu0 5
    %992 = vperm.xlu0 %991, %v28
    %v993 = vpop.permute.xlu0 %992
    %995 = vset.pattern.permute.xlu0 5
    %996 = vperm.xlu0 %995, %v29
    %v997 = vpop.permute.xlu0 %996
    %999 = vset.pattern.permute.xlu0 5
    %1000 = vperm.xlu0 %999, %v30
    %v1001 = vpop.permute.xlu0 %1000
    %1003 = vset.pattern.permute.xlu0 5
    %1004 = vperm.xlu0 %1003, %v31
    %v1005 = vpop.permute.xlu0 %1004
    %1007 = vset.pattern.permute.xlu0 5
    %1008 = vperm.xlu0 %1007, %v32
    %v1009 = vpop.permute.xlu0 %1008
    %1011 = vset.pattern.permute.xlu0 5
    %1012 = vperm.xlu0 %1011, %v33
    %v1013 = vpop.permute.xlu0 %1012
    %1015 = vset.pattern.permute.xlu0 5
    %1016 = vperm.xlu0 %1015, %v34
    %v1017 = vpop.permute.xlu0 %1016
    %v1019 = vmul.f32 %v939, %v957
    %v1020 = vmul.f32 %v940, %v961
    %v1021 = vmul.f32 %v941, %v965
    %v1022 = vmul.f32 %v942, %v969
    %v1023 = vmul.f32 %v943, %v973
    %v1024 = vmul.f32 %v944, %v977
    %v1025 = vmul.f32 %v945, %v981
    %v1026 = vmul.f32 %v946, %v985
    %v1027 = vmul.f32 %v947, %v989
    %v1028 = vmul.f32 %v948, %v993
    %v1029 = vmul.f32 %v949, %v997
    %v1030 = vmul.f32 %v950, %v1001
    %v1031 = vmul.f32 %v951, %v1005
    %v1032 = vmul.f32 %v952, %v1009
    %v1033 = vmul.f32 %v953, %v1013
    %v1034 = vmul.f32 %v954, %v1017
    %vm1035 = vcmask 64512
    %v1036 = vsel %vm1035, %v1019, 0.0
    %v1037 = vsel %vm1035, %v1020, 0.0
    %v1038 = vadd.f32 %v1036, %v1037
    %v1039 = vsel %vm1035, %v1021, 0.0
    %v1040 = vadd.f32 %v1038, %v1039
    %v1041 = vsel %vm1035, %v1022, 0.0
    %v1042 = vadd.f32 %v1040, %v1041
    %v1043 = vsel %vm1035, %v1023, 0.0
    %v1044 = vadd.f32 %v1042, %v1043
    %v1045 = vsel %vm1035, %v1024, 0.0
    %v1046 = vadd.f32 %v1044, %v1045
    %v1047 = vsel %vm1035, %v1025, 0.0
    %v1048 = vadd.f32 %v1046, %v1047
    %v1049 = vsel %vm1035, %v1026, 0.0
    %v1050 = vadd.f32 %v1048, %v1049
    %v1051 = vsel %vm1035, %v1027, 0.0
    %v1052 = vadd.f32 %v1050, %v1051
    %v1053 = vsel %vm1035, %v1028, 0.0
    %v1054 = vadd.f32 %v1052, %v1053
    %v1055 = vsel %vm1035, %v1029, 0.0
    %v1056 = vadd.f32 %v1054, %v1055
    %v1057 = vsel %vm1035, %v1030, 0.0
    %v1058 = vadd.f32 %v1056, %v1057
    %v1059 = vsel %vm1035, %v1031, 0.0
    %v1060 = vadd.f32 %v1058, %v1059
    %v1061 = vsel %vm1035, %v1032, 0.0
    %v1062 = vadd.f32 %v1060, %v1061
    %v1063 = vsel %vm1035, %v1033, 0.0
    %v1064 = vadd.f32 %v1062, %v1063
    %v1065 = vsel %vm1035, %v1034, 0.0
    %v1066 = vadd.f32 %v1064, %v1065
    %v1067 = vrot.slane %v1066, 4
    %v1068 = vadd.f32 %v1066, %v1067
    %v1069 = vrot.slane %v1068, 2
    %v1070 = vadd.f32 %v1068, %v1069
    %v1071 = vrot.slane %v1070, 1
    %v1072 = vadd.f32 %v1070, %v1071
    %1074 = vset.pattern.permute.xlu0 7
    %1075 = vperm.xlu0 %1074, %v35
    %v1076 = vpop.permute.xlu0 %1075
    %v1078 = vadd.f32 %v1072, %v1076
    %1079 = vset.pattern.permute.xlu0 6
    %1080 = vperm.xlu0 %1079, %v19
    %v1081 = vpop.permute.xlu0 %1080
    %1083 = vset.pattern.permute.xlu0 6
    %1084 = vperm.xlu0 %1083, %v20
    %v1085 = vpop.permute.xlu0 %1084
    %1087 = vset.pattern.permute.xlu0 6
    %1088 = vperm.xlu0 %1087, %v21
    %v1089 = vpop.permute.xlu0 %1088
    %1091 = vset.pattern.permute.xlu0 6
    %1092 = vperm.xlu0 %1091, %v22
    %v1093 = vpop.permute.xlu0 %1092
    %1095 = vset.pattern.permute.xlu0 6
    %1096 = vperm.xlu0 %1095, %v23
    %v1097 = vpop.permute.xlu0 %1096
    %1099 = vset.pattern.permute.xlu0 6
    %1100 = vperm.xlu0 %1099, %v24
    %v1101 = vpop.permute.xlu0 %1100
    %1103 = vset.pattern.permute.xlu0 6
    %1104 = vperm.xlu0 %1103, %v25
    %v1105 = vpop.permute.xlu0 %1104
    %1107 = vset.pattern.permute.xlu0 6
    %1108 = vperm.xlu0 %1107, %v26
    %v1109 = vpop.permute.xlu0 %1108
    %1111 = vset.pattern.permute.xlu0 6
    %1112 = vperm.xlu0 %1111, %v27
    %v1113 = vpop.permute.xlu0 %1112
    %1115 = vset.pattern.permute.xlu0 6
    %1116 = vperm.xlu0 %1115, %v28
    %v1117 = vpop.permute.xlu0 %1116
    %1119 = vset.pattern.permute.xlu0 6
    %1120 = vperm.xlu0 %1119, %v29
    %v1121 = vpop.permute.xlu0 %1120
    %1123 = vset.pattern.permute.xlu0 6
    %1124 = vperm.xlu0 %1123, %v30
    %v1125 = vpop.permute.xlu0 %1124
    %1127 = vset.pattern.permute.xlu0 6
    %1128 = vperm.xlu0 %1127, %v31
    %v1129 = vpop.permute.xlu0 %1128
    %1131 = vset.pattern.permute.xlu0 6
    %1132 = vperm.xlu0 %1131, %v32
    %v1133 = vpop.permute.xlu0 %1132
    %1135 = vset.pattern.permute.xlu0 6
    %1136 = vperm.xlu0 %1135, %v33
    %v1137 = vpop.permute.xlu0 %1136
    %1139 = vset.pattern.permute.xlu0 6
    %1140 = vperm.xlu0 %1139, %v34
    %v1141 = vpop.permute.xlu0 %1140
    %v1143 = vmul.f32 %v939, %v1081
    %v1144 = vmul.f32 %v940, %v1085
    %v1145 = vmul.f32 %v941, %v1089
    %v1146 = vmul.f32 %v942, %v1093
    %v1147 = vmul.f32 %v943, %v1097
    %v1148 = vmul.f32 %v944, %v1101
    %v1149 = vmul.f32 %v945, %v1105
    %v1150 = vmul.f32 %v946, %v1109
    %v1151 = vmul.f32 %v947, %v1113
    %v1152 = vmul.f32 %v948, %v1117
    %v1153 = vmul.f32 %v949, %v1121
    %v1154 = vmul.f32 %v950, %v1125
    %v1155 = vmul.f32 %v951, %v1129
    %v1156 = vmul.f32 %v952, %v1133
    %v1157 = vmul.f32 %v953, %v1137
    %v1158 = vmul.f32 %v954, %v1141
    %v1159 = vsel %vm1035, %v1143, 0.0
    %v1160 = vsel %vm1035, %v1144, 0.0
    %v1161 = vadd.f32 %v1159, %v1160
    %v1162 = vsel %vm1035, %v1145, 0.0
    %v1163 = vadd.f32 %v1161, %v1162
    %v1164 = vsel %vm1035, %v1146, 0.0
    %v1165 = vadd.f32 %v1163, %v1164
    %v1166 = vsel %vm1035, %v1147, 0.0
    %v1167 = vadd.f32 %v1165, %v1166
    %v1168 = vsel %vm1035, %v1148, 0.0
    %v1169 = vadd.f32 %v1167, %v1168
    %v1170 = vsel %vm1035, %v1149, 0.0
    %v1171 = vadd.f32 %v1169, %v1170
    %v1172 = vsel %vm1035, %v1150, 0.0
    %v1173 = vadd.f32 %v1171, %v1172
    %v1174 = vsel %vm1035, %v1151, 0.0
    %v1175 = vadd.f32 %v1173, %v1174
    %v1176 = vsel %vm1035, %v1152, 0.0
    %v1177 = vadd.f32 %v1175, %v1176
    %v1178 = vsel %vm1035, %v1153, 0.0
    %v1179 = vadd.f32 %v1177, %v1178
    %v1180 = vsel %vm1035, %v1154, 0.0
    %v1181 = vadd.f32 %v1179, %v1180
    %v1182 = vsel %vm1035, %v1155, 0.0
    %v1183 = vadd.f32 %v1181, %v1182
    %v1184 = vsel %vm1035, %v1156, 0.0
    %v1185 = vadd.f32 %v1183, %v1184
    %v1186 = vsel %vm1035, %v1157, 0.0
    %v1187 = vadd.f32 %v1185, %v1186
    %v1188 = vsel %vm1035, %v1158, 0.0
    %v1189 = vadd.f32 %v1187, %v1188
    %v1190 = vrot.slane %v1189, 4
    %v1191 = vadd.f32 %v1189, %v1190
    %v1192 = vrot.slane %v1191, 2
    %v1193 = vadd.f32 %v1191, %v1192
    %v1194 = vrot.slane %v1193, 1
    %v1195 = vadd.f32 %v1193, %v1194
    %1197 = vset.pattern.permute.xlu0 7
    %1198 = vperm.xlu0 %1197, %v36
    %v1199 = vpop.permute.xlu0 %1198
    %v1201 = vadd.f32 %v1195, %v1199
    %v1202 = vxor.u32 %v1201, 2147483648
    %v1203 = vmul.f32 %v1202, 1.442695
    %v1204 = vpow.pop %v1203
    %v1205 = vadd.f32 %v1204, 1.0
    %v1206 = vrcp.pop %v1205
    %v1207 = vmul.f32 %v1205, %v1206
    %v1208 = vsub.f32 1.0, %v1207
    %v1209 = vmul.f32 %v1206, %v1208
    %v1210 = vadd.f32 %v1206, %v1209
    %vm1211 = vweird.f32 %v1205
    %vm1212 = vweird.f32 %v1206
    %vm1213 = vmor %vm1211, %vm1212
    %v1214 = vsel %vm1213, %v1206, %v1210
    %v1215 = vand.u32 2147483647, %v1205
    %vm1216 = vcmp.eq.f32.partialorder %v1215, 8.507059e+37
    %v1217 = vand.u32 %v1205, 2147483648
    %v1218 = vor.u32 1.1754944e-38, %v1217
    %v1219 = vsel %vm1216, %v1218, %v1214
    %v1220 = vmul.f32 1.0, %v1219
    %v1221 = vmul.f32 %v1220, 5.0
    %v1222 = vadd.f32 %v1221, 0.01
    %vm1223 = vcmask 57344
    %1224 = vst.msk [vmem:[#allocation2] sm:$0x1] %vm1223, %v1078
    %1225 = vst.msk [vmem:[#allocation2 + $0x1] sm:$0x1] %vm1223, %v1222
    // Predicated region
    $region18: #{tpu_custom_call.1} parent=1 // pred_check
      _
    $region19: #{tpu_custom_call.1} parent=1 // pred_check_branch
      %1227 = sbr.rel (0) target = $region21
    $region20: #{tpu_custom_call.1} parent=1 // pred_region
      %1229 = vsyncadd [#allocation3], 0
      %s1231 = sshll.u32 [#allocation2], 4
      %s1232 = int_to_ptr.vmem [resolvable:$true] %s1231
      %s1233 = sshll.u32 %s4, 4
      %s1234 = int_to_ptr.hbm [resolvable:$true] %s1233
      %1236 = dma.vmem_to_hbm [thread:$0]  %s1232, 32, %s1234, [#allocation3]
    $region21: #{tpu_custom_call.1} parent=1 // pred_fallthru
      _
    // Predicated region
    $region22: #{tpu_custom_call.1} parent=1 // pred_check
      _
    $region23: #{tpu_custom_call.1} parent=1 // pred_check_branch
      %1238 = sbr.rel (0) target = $region25
    $region24: #{tpu_custom_call.1} parent=1 // pred_region
      %1240 = dma.done [#allocation3], 32
    $region25: #{tpu_custom_call.1} parent=1 // pred_fallthru
      _
    %1241 = vsyncpa [#allocation3], 1

</llo_original>
